<compile_context>
chip_gen: v7x
topology: tpu7x:2x2x1
jax: 0.10.0
libtpu: 0.0.40
codegen_flags: <defaults>
</compile_context>

<pallas_src>
import functools

import jax
import jax.numpy as jnp
from jax.experimental import pallas as pl
from jax.experimental.pallas import tpu as pltpu


def _posenc_add_kernel(seq_ref, pos_ref, out_ref):
    # pos_ref block is (tile_t, 1, E); jnp broadcasting covers the batch axis.
    out_ref[...] = seq_ref[...] + pos_ref[...]


def _posenc_add_dropout_kernel(seq_ref, pos_ref, seed_ref, out_ref, *, rate):
    # Distinct seed per grid step so tiles get independent dropout masks.
    step = pl.program_id(0) * pl.num_programs(1) + pl.program_id(1)
    pltpu.prng_seed(seed_ref[0] + step)

    x = seq_ref[...] + pos_ref[...]
    bits = pltpu.bitcast(pltpu.prng_random_bits(x.shape), jnp.uint32)
    # Uniform [0, 1) from the top 24 bits.
    u = (bits >> 8).astype(jnp.float32) * (1.0 / (1 << 24))
    keep = u >= rate
    scale = 1.0 / (1.0 - rate)
    out_ref[...] = jnp.where(
        keep, x.astype(jnp.float32) * scale, 0.0
    ).astype(out_ref.dtype)


def pos_encoding_learnable(seq, pos_embed, *, dropout_rate=None, seed=0,
                           training=True):
    """out = dropout(seq + pos_embed); pos_embed broadcasts over the batch axis."""
    T, B, E = seq.shape
    assert pos_embed.shape == (T, 1, E), (seq.shape, pos_embed.shape)
    pos_embed = pos_embed.astype(seq.dtype)

    # --- tile sizing: ~2 MiB per buffer, embed_dim kept whole (lane-dense) ---
    itemsize = jnp.dtype(seq.dtype).itemsize
    target_block_bytes = 2 * 1024 * 1024
    row_bytes = max(1, E * itemsize)
    target_rows = max(1, target_block_bytes // row_bytes)  # rows of flat (T*B)
    if B * row_bytes <= target_block_bytes:
        tile_b = B                                   # full batch per tile
        tile_t = max(1, min(T, target_rows // B))
    else:
        tile_t = 1                                   # huge batch*embed: tile batch
        tile_b = min(B, max(8, (target_rows // 8) * 8))  # keep multiple of 8

    grid = (pl.cdiv(T, tile_t), pl.cdiv(B, tile_b))

    seq_spec = pl.BlockSpec((tile_t, tile_b, E), lambda t, b: (t, b, 0))
    # pos_embed tile depends only on the token index -> reused across batch tiles.
    pos_spec = pl.BlockSpec((tile_t, 1, E), lambda t, b: (t, 0, 0))
    out_spec = pl.BlockSpec((tile_t, tile_b, E), lambda t, b: (t, b, 0))

    compiler_params = pltpu.CompilerParams(
        dimension_semantics=("parallel", "parallel"))

    apply_dropout = bool(training) and dropout_rate is not None and dropout_rate > 0.0

    if not apply_dropout:
        return pl.pallas_call(
            _posenc_add_kernel,
            out_shape=jax.ShapeDtypeStruct(seq.shape, seq.dtype),
            grid=grid,
            in_specs=[seq_spec, pos_spec],
            out_specs=out_spec,
            input_output_aliases={0: 0},   # add in place into the seq buffer
            compiler_params=compiler_params,
        )(seq, pos_embed)

    seed_arr = jnp.asarray([seed], dtype=jnp.int32)
    kernel = functools.partial(_posenc_add_dropout_kernel,
                               rate=float(dropout_rate))
    return pl.pallas_call(
        kernel,
        out_shape=jax.ShapeDtypeStruct(seq.shape, seq.dtype),
        grid=grid,
        in_specs=[seq_spec, pos_spec,
                  pl.BlockSpec(memory_space=pltpu.MemorySpace.SMEM)],
        out_specs=out_spec,
        input_output_aliases={0: 0},
        compiler_params=compiler_params,
    )(seq, pos_embed, seed_arr)


if __name__ == "__main__":
    # Small deterministic example: num_tokens=8, batch=2, embed_dim=32.
    key = jax.random.PRNGKey(0)
    k_seq, k_pos = jax.random.split(key)
    num_tokens, batch, embed_dim = 8, 2, 32

    seq = jax.random.normal(
        k_seq, (num_tokens, batch, embed_dim), dtype=jnp.float32
    ).astype(jnp.bfloat16)
    # trunc_normal_(std=0.02) init for the learnable positional embedding.
    pos_embed = (0.02 * jax.random.truncated_normal(
        k_pos, -2.0, 2.0, (num_tokens, 1, embed_dim), dtype=jnp.float32
    )).astype(jnp.bfloat16)

    # Module default is dropout=None -> identity, so forward is seq + pos_embed.
    out = pos_encoding_learnable(seq, pos_embed, dropout_rate=None)
    out = jax.block_until_ready(out)

    ref = seq + pos_embed  # same bf16 broadcast add
    assert out.shape == ref.shape and out.dtype == ref.dtype
    assert jnp.allclose(out.astype(jnp.float32), ref.astype(jnp.float32),
                        atol=1e-2, rtol=1e-2)
    print("KERNEL_OK")
</pallas_src>

<mosaic_0001>
module attributes {stable_mosaic.version = 11 : i64} {
  func.func @_posenc_add_kernel(%arg0: i32, %arg1: i32, %arg2: memref<8x2x32xbf16, #tpu.memory_space<vmem>>, %arg3: memref<8x1x32xbf16, #tpu.memory_space<vmem>>, %arg4: memref<8x2x32xbf16, #tpu.memory_space<vmem>>) attributes {dimension_semantics = [#tpu.dimension_semantics<parallel>, #tpu.dimension_semantics<parallel>], iteration_bounds = array<i64: 1, 1>, scalar_prefetch = 0 : i64, scratch_operands = 0 : i64, tpu.core_type = #tpu.core_type<tc>, window_params = [{transform_indices = @transform_0, window_bounds = array<i64: 8, 2, 32>}, {transform_indices = @transform_1, window_bounds = array<i64: 8, 1, 32>}, {transform_indices = @transform_2, window_bounds = array<i64: 8, 2, 32>}]} {
    %c0 = arith.constant 0 : index
    %c0_0 = arith.constant 0 : index
    %c0_1 = arith.constant 0 : index
    %0 = vector.load %arg2[%c0, %c0_0, %c0_1] : memref<8x2x32xbf16, #tpu.memory_space<vmem>>, vector<8x2x32xbf16>
    %c0_2 = arith.constant 0 : index
    %c0_3 = arith.constant 0 : index
    %c0_4 = arith.constant 0 : index
    %1 = vector.load %arg3[%c0_2, %c0_3, %c0_4] : memref<8x1x32xbf16, #tpu.memory_space<vmem>>, vector<8x1x32xbf16>
    %2 = vector.broadcast %1 : vector<8x1x32xbf16> to vector<8x2x32xbf16>
    %3 = arith.addf %0, %2 : vector<8x2x32xbf16>
    %c0_5 = arith.constant 0 : index
    %c0_6 = arith.constant 0 : index
    %c0_7 = arith.constant 0 : index
    %4 = vector.load %arg4[%c0_5, %c0_6, %c0_7] : memref<8x2x32xbf16, #tpu.memory_space<vmem>>, vector<8x2x32xbf16>
    tpu.vector_store %arg4[%c0_5, %c0_6, %c0_7], %3 {strides = array<i32>} : memref<8x2x32xbf16, #tpu.memory_space<vmem>>, vector<8x2x32xbf16>,
    return
  }
  func.func @transform_0(%arg0: i32, %arg1: i32) -> (i32, i32, i32) {
    %c0_i32 = arith.constant 0 : i32
    %c0_i32_0 = arith.constant 0 : i32
    return %arg0, %arg1, %c0_i32 : i32, i32, i32
  }
  func.func @transform_1(%arg0: i32, %arg1: i32) -> (i32, i32, i32) {
    %c0_i32 = arith.constant 0 : i32
    %c0_i32_0 = arith.constant 0 : i32
    %c0_i32_1 = arith.constant 0 : i32
    return %arg0, %c0_i32, %c0_i32_0 : i32, i32, i32
  }
  func.func @transform_2(%arg0: i32, %arg1: i32) -> (i32, i32, i32) {
    %c0_i32 = arith.constant 0 : i32
    %c0_i32_0 = arith.constant 0 : i32
    return %arg0, %arg1, %c0_i32 : i32, i32, i32
  }
}

</mosaic_0001>

<llo_original>
// kernel: tpu_custom_call.1
$region0: #{tpu_custom_call.1}
  #allocation0 [shape = 'u32[]', space=smem, size = 0x4, offset = 0x4, fixed_abs, tag = 'smem constant byte address 0x4 - core index']
  #allocation1 [shape = 'u32[144,128]{1,0:T(1,128)}', space=vmem, size = 0x12000, scoped, tag = 'internal scratch']
  %s0 = inlined_call_operand.hbm [shape: bf16[8,2,32], index: 0, kind: input, shape index: {}, may-alias: {0,2}]
  %s1 = inlined_call_operand.vmem [shape: bf16[8,1,32], index: 1, kind: input, shape index: {}]
  %s2 = inlined_call_operand.hbm [shape: bf16[8,2,32], index: 2, kind: output, shape index: {}, may-alias: {0,2}]
  %s3 = sld [smem:[#allocation0]]
  $region22: #{tpu_custom_call.1} parent=0
    _
  %s5 = ssub.s32 1, %s3
  %s6 = scalar_select 0, %s5, %s3
  $region1: #{tpu_custom_call.1} parent=0
    #allocation2 [shape = 'u8[4096]{0}', space=vmem, size = 0x1000, scoped, tag = 'input window, operand 0, single buffered']
    #allocation3 [shape = 's32[1]{0}', space=sflag, size = 0x4, scoped, tag = 'scoped memory for tpu_custom_call.1']
    #allocation4 [shape = 's32[1]{0}', space=sflag, size = 0x4, scoped, tag = 'scoped memory for tpu_custom_call.1']
    #allocation5 [shape = 'u8[4096]{0}', space=vmem, size = 0x1000, scoped, tag = 'output window, operand 0, single buffered']
    %7 = vsyncpa [#allocation3], 0
    %8 = vsyncpa [#allocation4], 0
    // Predicated region
    $region2: #{tpu_custom_call.1} parent=1 // pred_check
      _
    $region3: #{tpu_custom_call.1} parent=1 // pred_check_branch
      %10 = sbr.rel (0) target = $region5
    $region4: #{tpu_custom_call.1} parent=1 // pred_region
      %s12 = ssub.s32 128, 128
      %13 = vsyncadd [#allocation3], %s12
      %s14 = sshll.u32 [#allocation2], 4
      %s15 = int_to_ptr.vmem [resolvable:$true] %s14
      %20 = dma.hbm_to_vmem [thread:$0]  %s0, 128, %s15, [#allocation3], 16, 16, 1
    $region5: #{tpu_custom_call.1} parent=1 // pred_fallthru
      _
    // Predicated region
    $region6: #{tpu_custom_call.1} parent=1 // pred_check
      _
    $region7: #{tpu_custom_call.1} parent=1 // pred_check_branch
      %22 = sbr.rel (0) target = $region9
    $region8: #{tpu_custom_call.1} parent=1 // pred_region
      _
    $region9: #{tpu_custom_call.1} parent=1 // pred_fallthru
      _
    // Predicated region
    $region10: #{tpu_custom_call.1} parent=1 // pred_check
      _
    $region11: #{tpu_custom_call.1} parent=1 // pred_check_branch
      %24 = sbr.rel (0) target = $region13
    $region12: #{tpu_custom_call.1} parent=1 // pred_region
      %25 = dma.done [#allocation3], 128
    $region13: #{tpu_custom_call.1} parent=1 // pred_fallthru
      _
    %v26 = vld [vmem:[#allocation2] sm:$0x1]
    %v27 = vld [vmem:[#allocation2 + $0x1] sm:$0x1]
    %v28 = vld [vmem:[#allocation2 + $0x2] sm:$0x1]
    %v29 = vld [vmem:[#allocation2 + $0x3] sm:$0x1]
    %v30 = vld [vmem:[#allocation2 + $0x4] sm:$0x1]
    %v31 = vld [vmem:[#allocation2 + $0x5] sm:$0x1]
    %v32 = vld [vmem:[#allocation2 + $0x6] sm:$0x1]
    %v33 = vld [vmem:[#allocation2 + $0x7] sm:$0x1]
    %v34 = vld [vmem:[%s1] sm:$0x1]
    %v35 = vld [vmem:[%s1 + $0x1] sm:$0x1]
    %v36 = vld [vmem:[%s1 + $0x2] sm:$0x1]
    %v37 = vld [vmem:[%s1 + $0x3] sm:$0x1]
    %v38 = vld [vmem:[%s1 + $0x4] sm:$0x1]
    %v39 = vld [vmem:[%s1 + $0x5] sm:$0x1]
    %v40 = vld [vmem:[%s1 + $0x6] sm:$0x1]
    %v41 = vld [vmem:[%s1 + $0x7] sm:$0x1]
    %v43 = vpack.i.b16 %v34, %v34
    %v45 = vlaneseq
    %v46 = vshrl.u32 %v45, 7
    %v47 = vsub.s32 0, %v46
    %v48 = vrot.slane %v43, %v47
    %v50 = vpack.i.b16 %v35, %v35
    %v52 = vlaneseq
    %v53 = vshrl.u32 %v52, 7
    %v54 = vsub.s32 0, %v53
    %v55 = vrot.slane %v50, %v54
    %v57 = vpack.i.b16 %v36, %v36
    %v59 = vlaneseq
    %v60 = vshrl.u32 %v59, 7
    %v61 = vsub.s32 0, %v60
    %v62 = vrot.slane %v57, %v61
    %v64 = vpack.i.b16 %v37, %v37
    %v66 = vlaneseq
    %v67 = vshrl.u32 %v66, 7
    %v68 = vsub.s32 0, %v67
    %v69 = vrot.slane %v64, %v68
    %v71 = vpack.i.b16 %v38, %v38
    %v73 = vlaneseq
    %v74 = vshrl.u32 %v73, 7
    %v75 = vsub.s32 0, %v74
    %v76 = vrot.slane %v71, %v75
    %v78 = vpack.i.b16 %v39, %v39
    %v80 = vlaneseq
    %v81 = vshrl.u32 %v80, 7
    %v82 = vsub.s32 0, %v81
    %v83 = vrot.slane %v78, %v82
    %v85 = vpack.i.b16 %v40, %v40
    %v87 = vlaneseq
    %v88 = vshrl.u32 %v87, 7
    %v89 = vsub.s32 0, %v88
    %v90 = vrot.slane %v85, %v89
    %v92 = vpack.i.b16 %v41, %v41
    %v94 = vlaneseq
    %v95 = vshrl.u32 %v94, 7
    %v96 = vsub.s32 0, %v95
    %v97 = vrot.slane %v92, %v96
    %v98 = vadd.bf16 %v26, %v48
    %v99 = vadd.bf16 %v27, %v55
    %v100 = vadd.bf16 %v28, %v62
    %v101 = vadd.bf16 %v29, %v69
    %v102 = vadd.bf16 %v30, %v76
    %v103 = vadd.bf16 %v31, %v83
    %v104 = vadd.bf16 %v32, %v90
    %v105 = vadd.bf16 %v33, %v97
    %vm106 = vcmask 253952
    %107 = vst.msk [vmem:[#allocation5] sm:$0x1] %vm106, %v98
    %108 = vst.msk [vmem:[#allocation5 + $0x1] sm:$0x1] %vm106, %v99
    %109 = vst.msk [vmem:[#allocation5 + $0x2] sm:$0x1] %vm106, %v100
    %110 = vst.msk [vmem:[#allocation5 + $0x3] sm:$0x1] %vm106, %v101
    %111 = vst.msk [vmem:[#allocation5 + $0x4] sm:$0x1] %vm106, %v102
    %112 = vst.msk [vmem:[#allocation5 + $0x5] sm:$0x1] %vm106, %v103
    %113 = vst.msk [vmem:[#allocation5 + $0x6] sm:$0x1] %vm106, %v104
    %114 = vst.msk [vmem:[#allocation5 + $0x7] sm:$0x1] %vm106, %v105
    // Predicated region
    $region14: #{tpu_custom_call.1} parent=1 // pred_check
      _
    $region15: #{tpu_custom_call.1} parent=1 // pred_check_branch
      %116 = sbr.rel (0) target = $region17
    $region16: #{tpu_custom_call.1} parent=1 // pred_region
      %s118 = ssub.s32 128, 128
      %119 = vsyncadd [#allocation4], %s118
      %s120 = sshll.u32 [#allocation5], 4
      %s121 = int_to_ptr.vmem [resolvable:$true] %s120
      %126 = dma.vmem_to_hbm [thread:$0]  %s121, 128, %s2, [#allocation4], 16, 16, 1
    $region17: #{tpu_custom_call.1} parent=1 // pred_fallthru
      _
    // Predicated region
    $region18: #{tpu_custom_call.1} parent=1 // pred_check
      _
    $region19: #{tpu_custom_call.1} parent=1 // pred_check_branch
      %128 = sbr.rel (0) target = $region21
    $region20: #{tpu_custom_call.1} parent=1 // pred_region
      %129 = dma.done [#allocation4], 128
    $region21: #{tpu_custom_call.1} parent=1 // pred_fallthru
      _
    %130 = vsyncpa [#allocation3], 1
    %131 = vsyncpa [#allocation4], 1

</llo_original>
